<compile_context>
chip_gen: v7x
topology: tpu7x:2x2x1
jax: 0.10.0
libtpu: 0.0.40
codegen_flags: <defaults>
</compile_context>

<pallas_src>
import functools
import math

import jax
import jax.numpy as jnp
from jax.experimental import pallas as pl
from jax.experimental.pallas import tpu as pltpu


# ----------------------------------------------------------------------------- helpers
def _round_up(x, m):
    return ((x + m - 1) // m) * m


def _tpu_vmem_bytes():
    try:
        return max(int(pltpu.get_tpu_info().vmem_capacity_bytes), 32 << 20)
    except Exception:
        return 64 << 20  # conservative default (v7x per-core VMEM)


def _pick_tile_m(M, K_g, Cout_g):
    """Largest lane-aligned M tile whose double-buffered footprint fits comfortably in VMEM."""
    vmem = _tpu_vmem_bytes()
    budget = vmem // 3  # headroom for resident weights / compiler scratch
    # Bytes per M-row held live per phase (x2 for the double-buffered pipeline):
    #   patches tile (bf16) + conv-output tile (f32) + elementwise output tile (f32)
    per_row = 2 * (2 * K_g) + 2 * (4 * Cout_g) + 2 * (4 * Cout_g)
    tm = (budget // max(per_row, 1)) // 128 * 128
    tm = max(128, min(tm, 2048))          # 512-2048 rows ~ measured HBM-roofline sweet spot
    return min(tm, _round_up(M, 128))


def _im2col_taps(x_nhwc, kH, kW, stride, padding):
    """(N,H,W,C) -> taps (kH*kW, C, N*Ho*Wo); tap index = dh*kW + dw."""
    N, H, W, C = x_nhwc.shape
    xp = jnp.pad(x_nhwc, ((0, 0), (padding, padding), (padding, padding), (0, 0)))
    Hp, Wp = H + 2 * padding, W + 2 * padding
    Ho = (Hp - kH) // stride + 1
    Wo = (Wp - kW) // stride + 1
    slabs = []
    for dh in range(kH):
        for dw in range(kW):
            slabs.append(xp[:, dh:dh + stride * (Ho - 1) + 1:stride,
                            dw:dw + stride * (Wo - 1) + 1:stride, :])
    taps = jnp.stack(slabs, axis=0)               # (T, N, Ho, Wo, C)
    taps = jnp.transpose(taps, (0, 4, 1, 2, 3))   # (T, C, N, Ho, Wo)
    return taps.reshape(kH * kW, C, N * Ho * Wo), Ho, Wo


# ----------------------------------------------------------------------------- kernels
def _conv_stats_kernel(p_ref, w_ref, y_ref, sum_ref, ssq_ref):
    # p_ref: (1, K_g, TM) bf16 ; w_ref: (1, Cout_g, K_g) bf16
    # Lane-dense matmul: result columns = TM (multiple of 128), bf16 MXU, f32 accumulate.
    y = jnp.dot(w_ref[0], p_ref[0], preferred_element_type=jnp.float32)   # (Cout_g, TM) f32
    y_ref[0] = y
    # Per-tile per-channel partial statistics for training-mode BatchNorm (f32 sums).
    sum_ref[0, 0] = jnp.sum(y, axis=1, keepdims=True)        # (Cout_g, 1)
    ssq_ref[0, 0] = jnp.sum(y * y, axis=1, keepdims=True)    # (Cout_g, 1)


def _bn_act_kernel(y_ref, scale_ref, shift_ref, alpha_ref, o_ref, *, with_act):
    # y_ref: (1, Cout_g, TM) f32 ; scale/shift/alpha: (1, Cout_g, 1) f32
    z = y_ref[0] * scale_ref[0] + shift_ref[0]                # BN affine (folded mean/var)
    if with_act:
        z = jnp.where(z >= 0.0, z, alpha_ref[0] * z)          # per-channel PReLU
    o_ref[0] = z.astype(o_ref.dtype)


# ----------------------------------------------------------------------------- wrapper
@functools.partial(jax.jit, static_argnames=("stride", "groups", "eps", "with_act"))
def _conv_bn_act_impl(x_nchw, weight, gamma, beta, alpha, *, stride, groups, eps, with_act):
    N, Cin, H, W = x_nchw.shape
    Cout, Cin_g, kH, kW = weight.shape
    assert Cin % groups == 0 and Cout % groups == 0 and Cin // groups == Cin_g
    assert gamma.shape == (Cout,) and beta.shape == (Cout,) and alpha.shape == (Cout,)
    G = groups
    Cout_g = Cout // G
    K_g = kH * kW * Cin_g
    padding = (kH - 1) // 2

    # --- im2col in bf16, laid out (G, K_g, M) so M lands on the lane axis and is streamed ---
    # TODO(synk): replace the materialized im2col with a kH*kW tap grid axis that streams
    # shifted windows of the padded NHWC input directly (removes the kH*kW x HBM inflation).
    x_nhwc = jnp.transpose(x_nchw, (0, 2, 3, 1)).astype(jnp.bfloat16)
    taps, Ho, Wo = _im2col_taps(x_nhwc, kH, kW, stride, padding)       # (T, Cin, M) bf16
    M = N * Ho * Wo

    TM = _pick_tile_m(M, K_g, Cout_g)
    M_pad = _round_up(M, TM)
    nT = M_pad // TM
    vmem_limit = int(min(0.6 * _tpu_vmem_bytes(), 96 * 2**20))

    per_group = [taps[:, g * Cin_g:(g + 1) * Cin_g, :].reshape(K_g, M) for g in range(G)]
    patches = jnp.stack(per_group, axis=0)                              # (G, K_g, M) bf16
    patches = jnp.pad(patches, ((0, 0), (0, 0), (0, M_pad - M)))        # zero pad rows -> 0 in stats

    w_t = jnp.transpose(weight.reshape(G, Cout_g, Cin_g, kH, kW),
                        (0, 1, 3, 4, 2)).reshape(G, Cout_g, K_g).astype(jnp.bfloat16)

    # ---------------- phase A: conv matmul (lane-dense) + per-tile channel sums ----------------
    flops_a = 2 * G * Cout_g * K_g * M_pad
    bytes_a = (patches.size * 2 + w_t.size * 2
               + G * Cout_g * M_pad * 4 + 2 * G * nT * Cout_g * 4)
    y_t, s_part, sq_part = pl.pallas_call(
        _conv_stats_kernel,
        out_shape=(
            jax.ShapeDtypeStruct((G, Cout_g, M_pad), jnp.float32),
            jax.ShapeDtypeStruct((G, nT, Cout_g, 1), jnp.float32),
            jax.ShapeDtypeStruct((G, nT, Cout_g, 1), jnp.float32),
        ),
        grid_spec=pltpu.PrefetchScalarGridSpec(
            num_scalar_prefetch=0,
            grid=(G, nT),
            in_specs=[
                pl.BlockSpec((1, K_g, TM), lambda g, i: (g, 0, i)),
                pl.BlockSpec((1, Cout_g, K_g), lambda g, i: (g, 0, 0)),
            ],
            out_specs=[
                pl.BlockSpec((1, Cout_g, TM), lambda g, i: (g, 0, i)),
                pl.BlockSpec((1, 1, Cout_g, 1), lambda g, i: (g, i, 0, 0)),
                pl.BlockSpec((1, 1, Cout_g, 1), lambda g, i: (g, i, 0, 0)),
            ],
        ),
        compiler_params=pltpu.CompilerParams(
            dimension_semantics=("parallel", "parallel"),
            vmem_limit_bytes=vmem_limit),
        cost_estimate=pl.CostEstimate(flops=int(flops_a), transcendentals=0,
                                      bytes_accessed=int(bytes_a)),
    )(patches, w_t)

    # --------- tiny per-channel BN statistics reduction (training-mode batch stats) ---------
    count = jnp.float32(M)                        # padded columns contribute 0 to both sums
    sum_y = jnp.sum(s_part, axis=1)[..., 0]       # (G, Cout_g), f32 accumulation
    sum_y2 = jnp.sum(sq_part, axis=1)[..., 0]
    mean = sum_y / count
    var = jnp.maximum(sum_y2 / count - mean * mean, 0.0)     # biased variance
    gamma_g = gamma.astype(jnp.float32).reshape(G, Cout_g)
    beta_g = beta.astype(jnp.float32).reshape(G, Cout_g)
    alpha_g = alpha.astype(jnp.float32).reshape(G, Cout_g)
    scale = gamma_g * jax.lax.rsqrt(var + jnp.float32(eps))
    shift = beta_g - mean * scale

    # ---------------- phase B: elementwise BN affine + PReLU (lane-dense over M) ----------------
    flops_b = 4 * G * Cout_g * M_pad
    bytes_b = 2 * G * Cout_g * M_pad * 4 + 3 * G * Cout_g * 4
    out_t = pl.pallas_call(
        functools.partial(_bn_act_kernel, with_act=with_act),
        out_shape=jax.ShapeDtypeStruct((G, Cout_g, M_pad), jnp.float32),
        grid_spec=pltpu.PrefetchScalarGridSpec(
            num_scalar_prefetch=0,
            grid=(G, nT),
            in_specs=[
                pl.BlockSpec((1, Cout_g, TM), lambda g, i: (g, 0, i)),
                pl.BlockSpec((1, Cout_g, 1), lambda g, i: (g, 0, 0)),
                pl.BlockSpec((1, Cout_g, 1), lambda g, i: (g, 0, 0)),
                pl.BlockSpec((1, Cout_g, 1), lambda g, i: (g, 0, 0)),
            ],
            out_specs=pl.BlockSpec((1, Cout_g, TM), lambda g, i: (g, 0, i)),
        ),
        compiler_params=pltpu.CompilerParams(
            dimension_semantics=("parallel", "parallel"),
            vmem_limit_bytes=vmem_limit),
        cost_estimate=pl.CostEstimate(flops=int(flops_b), transcendentals=0,
                                      bytes_accessed=int(bytes_b)),
    )(y_t, scale.reshape(G, Cout_g, 1), shift.reshape(G, Cout_g, 1),
      alpha_g.reshape(G, Cout_g, 1))

    # -------- back to NCHW (group-major channel order matches PyTorch grouped conv) --------
    out = out_t[:, :, :M].reshape(Cout, N, Ho, Wo)
    return jnp.transpose(out, (1, 0, 2, 3))


def conv_bn_act(x, weight, gamma, beta, alpha=None, *,
                stride=1, groups=1, eps=1e-5, with_act=True):
    """CBR (with_act=True) / CB (with_act=False) forward.  NCHW in, NCHW f32 out."""
    if alpha is None:
        alpha = jnp.zeros((weight.shape[0],), jnp.float32)
    return _conv_bn_act_impl(x, weight, gamma, beta, alpha,
                             stride=int(stride), groups=int(groups),
                             eps=float(eps), with_act=bool(with_act))


# ----------------------------------------------------------------------------- reference
def conv_bn_act_reference(x, weight, gamma, beta, alpha, *, stride, groups, eps, with_act):
    """Pure-JAX reference of the PyTorch forward (training-mode BN).  The matmul operands
    are rounded to bf16 to mirror the kernel's MXU input precision (f32 accumulation)."""
    xb = x.astype(jnp.bfloat16).astype(jnp.float32)
    wb = weight.astype(jnp.bfloat16).astype(jnp.float32)
    kH = weight.shape[2]
    pad = (kH - 1) // 2
    y = jax.lax.conv_general_dilated(
        xb, wb, window_strides=(stride, stride), padding=[(pad, pad), (pad, pad)],
        feature_group_count=groups, dimension_numbers=("NCHW", "OIHW", "NCHW"),
        precision=jax.lax.Precision.HIGHEST)
    mean = y.mean(axis=(0, 2, 3), keepdims=True)
    var = jnp.square(y - mean).mean(axis=(0, 2, 3), keepdims=True)
    z = (gamma.reshape(1, -1, 1, 1) * (y - mean) * jax.lax.rsqrt(var + eps)
         + beta.reshape(1, -1, 1, 1))
    if with_act:
        z = jnp.where(z >= 0.0, z, alpha.reshape(1, -1, 1, 1) * z)
    return z


# ----------------------------------------------------------------------------- demo / test
def _make_params(key, nIn, nOut, kSize, groups):
    kw, kg, kb = jax.random.split(key, 3)
    fan_in = (nIn // groups) * kSize * kSize
    weight = jax.random.normal(kw, (nOut, nIn // groups, kSize, kSize), jnp.float32) / math.sqrt(fan_in)
    gamma = 1.0 + 0.1 * jax.random.normal(kg, (nOut,), jnp.float32)    # BN weight
    beta = 0.1 * jax.random.normal(kb, (nOut,), jnp.float32)           # BN bias
    alpha = jnp.full((nOut,), 0.25, jnp.float32)                       # PReLU default init
    return weight, gamma, beta, alpha


if __name__ == "__main__":
    key = jax.random.PRNGKey(0)
    eps = 1e-5
    N = 2
    # Configs exercised by DownSampler's building blocks:
    #   (nIn, nOut, kSize, stride, groups, with_act)
    configs = [
        (4, 8, 3, 1, 1, True),     # CBR 3x3                       (inp_reinf-style)
        (8, 8, 1, 1, 4, True),     # CBR 1x1 grouped               (EESP proj_1x1)
        (4, 12, 3, 2, 1, True),    # CBR 3x3 stride-2 down-sampling
        (8, 8, 1, 1, 4, False),    # CB  1x1 grouped, no PReLU     (EESP conv_1x1_exp)
    ]
    for idx, (nIn, nOut, k, s, g, act) in enumerate(configs):
        key, kx, kp = jax.random.split(key, 3)
        x = jax.random.normal(kx, (N, nIn, 16, 16), jnp.float32)
        weight, gamma, beta, alpha = _make_params(kp, nIn, nOut, k, g)

        out = conv_bn_act(x, weight, gamma, beta, alpha,
                          stride=s, groups=g, eps=eps, with_act=act)
        out = jax.block_until_ready(out)

        ref = conv_bn_act_reference(x, weight, gamma, beta, alpha,
                                    stride=s, groups=g, eps=eps, with_act=act)
        assert out.shape == ref.shape, (idx, out.shape, ref.shape)
        max_err = float(jnp.max(jnp.abs(out - ref)))
        assert jnp.allclose(out, ref, rtol=1e-3, atol=1e-3), \
            f"config {idx} mismatch vs reference (max abs err {max_err})"

    print("KERNEL_OK")
</pallas_src>

<mosaic_0001>
module attributes {stable_mosaic.version = 11 : i64} {
  func.func @_conv_stats_kernel(%arg0: i32, %arg1: i32, %arg2: memref<1x36x512xbf16, #tpu.memory_space<vmem>>, %arg3: memref<1x8x36xbf16, #tpu.memory_space<vmem>>, %arg4: memref<1x8x512xf32, #tpu.memory_space<vmem>>, %arg5: memref<1x1x8x1xf32, #tpu.memory_space<vmem>>, %arg6: memref<1x1x8x1xf32, #tpu.memory_space<vmem>>) attributes {dimension_semantics = [#tpu.dimension_semantics<parallel>, #tpu.dimension_semantics<parallel>], iteration_bounds = array<i64: 1, 1>, scalar_prefetch = 0 : i64, scratch_operands = 0 : i64, tpu.core_type = #tpu.core_type<tc>, window_params = [{transform_indices = @transform_0, window_bounds = array<i64: 1, 36, 512>}, {transform_indices = @transform_1, window_bounds = array<i64: 1, 8, 36>}, {transform_indices = @transform_2, window_bounds = array<i64: 1, 8, 512>}, {transform_indices = @transform_3, window_bounds = array<i64: 1, 1, 8, 1>}, {transform_indices = @transform_4, window_bounds = array<i64: 1, 1, 8, 1>}]} {
    %c0 = arith.constant 0 : index
    %c0_0 = arith.constant 0 : index
    %c0_1 = arith.constant 0 : index
    %0 = vector.load %arg3[%c0, %c0_0, %c0_1] : memref<1x8x36xbf16, #tpu.memory_space<vmem>>, vector<1x8x36xbf16>
    %1 = vector.shape_cast %0 : vector<1x8x36xbf16> to vector<8x36xbf16>
    %c0_2 = arith.constant 0 : index
    %c0_3 = arith.constant 0 : index
    %c0_4 = arith.constant 0 : index
    %2 = vector.load %arg2[%c0_2, %c0_3, %c0_4] : memref<1x36x512xbf16, #tpu.memory_space<vmem>>, vector<1x36x512xbf16>
    %3 = vector.shape_cast %2 : vector<1x36x512xbf16> to vector<36x512xbf16>
    %cst = arith.constant dense<0.000000e+00> : vector<8x512xf32>
    %4 = tpu.matmul %1, %3, %cst {dimension_numbers = #tpu.dot_dimension_numbers<[1], [0], [0], [1], [0, 0, 1, 1], [], []>} : vector<8x36xbf16>, vector<36x512xbf16>, vector<8x512xf32> -> vector<8x512xf32>
    %c0_5 = arith.constant 0 : index
    %c0_6 = arith.constant 0 : index
    %c0_7 = arith.constant 0 : index
    %5 = vector.load %arg4[%c0_5, %c0_6, %c0_7] : memref<1x8x512xf32, #tpu.memory_space<vmem>>, vector<1x8x512xf32>
    %6 = vector.shape_cast %5 : vector<1x8x512xf32> to vector<8x512xf32>
    %7 = vector.shape_cast %4 : vector<8x512xf32> to vector<1x8x512xf32>
    tpu.vector_store %arg4[%c0_5, %c0_6, %c0_7], %7 {strides = array<i32>} : memref<1x8x512xf32, #tpu.memory_space<vmem>>, vector<1x8x512xf32>,
    %cst_8 = arith.constant dense<0.000000e+00> : vector<8xf32>
    %8 = vector.multi_reduction <add>, %4, %cst_8 [1] : vector<8x512xf32> to vector<8xf32>
    %9 = vector.shape_cast %8 : vector<8xf32> to vector<8x1xf32>
    %c0_9 = arith.constant 0 : index
    %c0_10 = arith.constant 0 : index
    %c0_11 = arith.constant 0 : index
    %c0_12 = arith.constant 0 : index
    %10 = vector.load %arg5[%c0_9, %c0_10, %c0_11, %c0_12] : memref<1x1x8x1xf32, #tpu.memory_space<vmem>>, vector<1x1x8x1xf32>
    %11 = vector.shape_cast %10 : vector<1x1x8x1xf32> to vector<8x1xf32>
    %12 = vector.shape_cast %9 : vector<8x1xf32> to vector<1x1x8x1xf32>
    tpu.vector_store %arg5[%c0_9, %c0_10, %c0_11, %c0_12], %12 {strides = array<i32>} : memref<1x1x8x1xf32, #tpu.memory_space<vmem>>, vector<1x1x8x1xf32>,
    %13 = arith.mulf %4, %4 : vector<8x512xf32>
    %cst_13 = arith.constant dense<0.000000e+00> : vector<8xf32>
    %14 = vector.multi_reduction <add>, %13, %cst_13 [1] : vector<8x512xf32> to vector<8xf32>
    %15 = vector.shape_cast %14 : vector<8xf32> to vector<8x1xf32>
    %c0_14 = arith.constant 0 : index
    %c0_15 = arith.constant 0 : index
    %c0_16 = arith.constant 0 : index
    %c0_17 = arith.constant 0 : index
    %16 = vector.load %arg6[%c0_14, %c0_15, %c0_16, %c0_17] : memref<1x1x8x1xf32, #tpu.memory_space<vmem>>, vector<1x1x8x1xf32>
    %17 = vector.shape_cast %16 : vector<1x1x8x1xf32> to vector<8x1xf32>
    %18 = vector.shape_cast %15 : vector<8x1xf32> to vector<1x1x8x1xf32>
    tpu.vector_store %arg6[%c0_14, %c0_15, %c0_16, %c0_17], %18 {strides = array<i32>} : memref<1x1x8x1xf32, #tpu.memory_space<vmem>>, vector<1x1x8x1xf32>,
    return
  }
  func.func @transform_0(%arg0: i32, %arg1: i32) -> (i32, i32, i32) {
    %c0_i32 = arith.constant 0 : i32
    %c0_i32_0 = arith.constant 0 : i32
    return %arg0, %c0_i32, %arg1 : i32, i32, i32
  }
  func.func @transform_1(%arg0: i32, %arg1: i32) -> (i32, i32, i32) {
    %c0_i32 = arith.constant 0 : i32
    %c0_i32_0 = arith.constant 0 : i32
    %c0_i32_1 = arith.constant 0 : i32
    return %arg0, %c0_i32, %c0_i32_0 : i32, i32, i32
  }
  func.func @transform_2(%arg0: i32, %arg1: i32) -> (i32, i32, i32) {
    %c0_i32 = arith.constant 0 : i32
    %c0_i32_0 = arith.constant 0 : i32
    return %arg0, %c0_i32, %arg1 : i32, i32, i32
  }
  func.func @transform_3(%arg0: i32, %arg1: i32) -> (i32, i32, i32, i32) {
    %c0_i32 = arith.constant 0 : i32
    %c0_i32_0 = arith.constant 0 : i32
    %c0_i32_1 = arith.constant 0 : i32
    return %arg0, %arg1, %c0_i32, %c0_i32_0 : i32, i32, i32, i32
  }
  func.func @transform_4(%arg0: i32, %arg1: i32) -> (i32, i32, i32, i32) {
    %c0_i32 = arith.constant 0 : i32
    %c0_i32_0 = arith.constant 0 : i32
    %c0_i32_1 = arith.constant 0 : i32
    return %arg0, %arg1, %c0_i32, %c0_i32_0 : i32, i32, i32, i32
  }
}

module attributes {stable_mosaic.version = 11 : i64} {
  func.func @_bn_act_kernel(%arg0: i32, %arg1: i32, %arg2: memref<1x8x512xf32, #tpu.memory_space<vmem>>, %arg3: memref<1x8x1xf32, #tpu.memory_space<vmem>>, %arg4: memref<1x8x1xf32, #tpu.memory_space<vmem>>, %arg5: memref<1x8x1xf32, #tpu.memory_space<vmem>>, %arg6: memref<1x8x512xf32, #tpu.memory_space<vmem>>) attributes {dimension_semantics = [#tpu.dimension_semantics<parallel>, #tpu.dimension_semantics<parallel>], iteration_bounds = array<i64: 1, 1>, scalar_prefetch = 0 : i64, scratch_operands = 0 : i64, tpu.core_type = #tpu.core_type<tc>, window_params = [{transform_indices = @transform_0, window_bounds = array<i64: 1, 8, 512>}, {transform_indices = @transform_1, window_bounds = array<i64: 1, 8, 1>}, {transform_indices = @transform_2, window_bounds = array<i64: 1, 8, 1>}, {transform_indices = @transform_3, window_bounds = array<i64: 1, 8, 1>}, {transform_indices = @transform_4, window_bounds = array<i64: 1, 8, 512>}]} {
    %c0 = arith.constant 0 : index
    %c0_0 = arith.constant 0 : index
    %c0_1 = arith.constant 0 : index
    %0 = vector.load %arg2[%c0, %c0_0, %c0_1] : memref<1x8x512xf32, #tpu.memory_space<vmem>>, vector<1x8x512xf32>
    %1 = vector.shape_cast %0 : vector<1x8x512xf32> to vector<8x512xf32>
    %c0_2 = arith.constant 0 : index
    %c0_3 = arith.constant 0 : index
    %c0_4 = arith.constant 0 : index
    %2 = vector.load %arg3[%c0_2, %c0_3, %c0_4] : memref<1x8x1xf32, #tpu.memory_space<vmem>>, vector<1x8x1xf32>
    %3 = vector.shape_cast %2 : vector<1x8x1xf32> to vector<8x1xf32>
    %4 = vector.broadcast %3 : vector<8x1xf32> to vector<8x512xf32>
    %5 = arith.mulf %1, %4 : vector<8x512xf32>
    %c0_5 = arith.constant 0 : index
    %c0_6 = arith.constant 0 : index
    %c0_7 = arith.constant 0 : index
    %6 = vector.load %arg4[%c0_5, %c0_6, %c0_7] : memref<1x8x1xf32, #tpu.memory_space<vmem>>, vector<1x8x1xf32>
    %7 = vector.shape_cast %6 : vector<1x8x1xf32> to vector<8x1xf32>
    %8 = vector.broadcast %7 : vector<8x1xf32> to vector<8x512xf32>
    %9 = arith.addf %5, %8 : vector<8x512xf32>
    %cst = arith.constant 0.000000e+00 : f32
    %10 = vector.broadcast %cst : f32 to vector<8x512xf32>
    %11 = arith.cmpf oge, %9, %10 : vector<8x512xf32>
    %c0_8 = arith.constant 0 : index
    %c0_9 = arith.constant 0 : index
    %c0_10 = arith.constant 0 : index
    %12 = vector.load %arg5[%c0_8, %c0_9, %c0_10] : memref<1x8x1xf32, #tpu.memory_space<vmem>>, vector<1x8x1xf32>
    %13 = vector.shape_cast %12 : vector<1x8x1xf32> to vector<8x1xf32>
    %14 = vector.broadcast %13 : vector<8x1xf32> to vector<8x512xf32>
    %15 = arith.mulf %14, %9 : vector<8x512xf32>
    %16 = arith.select %11, %9, %15 : vector<8x512xi1>, vector<8x512xf32>
    %c0_11 = arith.constant 0 : index
    %c0_12 = arith.constant 0 : index
    %c0_13 = arith.constant 0 : index
    %17 = vector.load %arg6[%c0_11, %c0_12, %c0_13] : memref<1x8x512xf32, #tpu.memory_space<vmem>>, vector<1x8x512xf32>
    %18 = vector.shape_cast %17 : vector<1x8x512xf32> to vector<8x512xf32>
    %19 = vector.shape_cast %16 : vector<8x512xf32> to vector<1x8x512xf32>
    tpu.vector_store %arg6[%c0_11, %c0_12, %c0_13], %19 {strides = array<i32>} : memref<1x8x512xf32, #tpu.memory_space<vmem>>, vector<1x8x512xf32>,
    return
  }
  func.func @transform_0(%arg0: i32, %arg1: i32) -> (i32, i32, i32) {
    %c0_i32 = arith.constant 0 : i32
    %c0_i32_0 = arith.constant 0 : i32
    return %arg0, %c0_i32, %arg1 : i32, i32, i32
  }
  func.func @transform_1(%arg0: i32, %arg1: i32) -> (i32, i32, i32) {
    %c0_i32 = arith.constant 0 : i32
    %c0_i32_0 = arith.constant 0 : i32
    %c0_i32_1 = arith.constant 0 : i32
    return %arg0, %c0_i32, %c0_i32_0 : i32, i32, i32
  }
  func.func @transform_2(%arg0: i32, %arg1: i32) -> (i32, i32, i32) {
    %c0_i32 = arith.constant 0 : i32
    %c0_i32_0 = arith.constant 0 : i32
    %c0_i32_1 = arith.constant 0 : i32
    return %arg0, %c0_i32, %c0_i32_0 : i32, i32, i32
  }
  func.func @transform_3(%arg0: i32, %arg1: i32) -> (i32, i32, i32) {
    %c0_i32 = arith.constant 0 : i32
    %c0_i32_0 = arith.constant 0 : i32
    %c0_i32_1 = arith.constant 0 : i32
    return %arg0, %c0_i32, %c0_i32_0 : i32, i32, i32
  }
  func.func @transform_4(%arg0: i32, %arg1: i32) -> (i32, i32, i32) {
    %c0_i32 = arith.constant 0 : i32
    %c0_i32_0 = arith.constant 0 : i32
    return %arg0, %c0_i32, %arg1 : i32, i32, i32
  }
}

</mosaic_0001>

<llo_original>
// kernel: _conv_bn_act_impl.3
$region0: #{_conv_bn_act_impl.3}
  #allocation0 [shape = 'u32[]', space=smem, size = 0x4, offset = 0x4, fixed_abs, tag = 'smem constant byte address 0x4 - core index']
  #allocation1 [shape = 'u32[144,128]{1,0:T(1,128)}', space=vmem, size = 0x12000, scoped, tag = 'internal scratch']
  %s0 = inlined_call_operand.vmem [shape: f32[1,8,512], index: 0, kind: input, shape index: {}]
  %s1 = inlined_call_operand.vmem [shape: f32[1,8,1], index: 1, kind: input, shape index: {}]
  %s2 = inlined_call_operand.vmem [shape: f32[1,8,1], index: 2, kind: input, shape index: {}]
  %s3 = inlined_call_operand.vmem [shape: f32[1,8,1], index: 3, kind: input, shape index: {}]
  %s4 = inlined_call_operand.vmem [shape: f32[1,8,512], index: 4, kind: output, shape index: {}]
  %s5 = sld [smem:[#allocation0]]
  $region26: #{_conv_bn_act_impl.3} parent=0
    _
  %s7 = ssub.s32 1, %s5
  %s8 = scalar_select 0, %s7, %s5
  // Predicated region
  $region2: #{_conv_bn_act_impl.3} parent=0 // pred_check
    _
  $region3: #{_conv_bn_act_impl.3} parent=0 // pred_check_branch
    %10 = sbr.rel (0) target = $region5
  $region4: #{_conv_bn_act_impl.3} parent=0 // pred_region
    _
  $region5: #{_conv_bn_act_impl.3} parent=0 // pred_fallthru
    _
  // Predicated region
  $region6: #{_conv_bn_act_impl.3} parent=0 // pred_check
    _
  $region7: #{_conv_bn_act_impl.3} parent=0 // pred_check_branch
    %12 = sbr.rel (0) target = $region9
  $region8: #{_conv_bn_act_impl.3} parent=0 // pred_region
    _
  $region9: #{_conv_bn_act_impl.3} parent=0 // pred_fallthru
    _
  // Predicated region
  $region10: #{_conv_bn_act_impl.3} parent=0 // pred_check
    _
  $region11: #{_conv_bn_act_impl.3} parent=0 // pred_check_branch
    %14 = sbr.rel (0) target = $region13
  $region12: #{_conv_bn_act_impl.3} parent=0 // pred_region
    _
  $region13: #{_conv_bn_act_impl.3} parent=0 // pred_fallthru
    _
  // Predicated region
  $region14: #{_conv_bn_act_impl.3} parent=0 // pred_check
    _
  $region15: #{_conv_bn_act_impl.3} parent=0 // pred_check_branch
    %16 = sbr.rel (0) target = $region17
  $region16: #{_conv_bn_act_impl.3} parent=0 // pred_region
    _
  $region17: #{_conv_bn_act_impl.3} parent=0 // pred_fallthru
    _
  %v17 = vld [vmem:[%s0] sm:$0xff]
  %v18 = vld [vmem:[%s0 + $0x8] sm:$0xff]
  %v19 = vld [vmem:[%s0 + $0x10] sm:$0xff]
  %v20 = vld [vmem:[%s0 + $0x18] sm:$0xff]
  %v21 = vld [vmem:[%s1] sm:$0xff]
  %23 = vset.pattern.permute.xlu0 0
  %24 = vperm.xlu0 %23, %v21
  %v25 = vpop.permute.xlu0 %24
  %v27 = vmul.f32 %v17, %v25
  %v28 = vmul.f32 %v18, %v25
  %v29 = vmul.f32 %v19, %v25
  %v30 = vmul.f32 %v20, %v25
  %v31 = vld [vmem:[%s2] sm:$0xff]
  %33 = vset.pattern.permute.xlu0 0
  %34 = vperm.xlu0 %33, %v31
  %v35 = vpop.permute.xlu0 %34
  %v37 = vadd.f32 %v27, %v35
  %v38 = vadd.f32 %v28, %v35
  %v39 = vadd.f32 %v29, %v35
  %v40 = vadd.f32 %v30, %v35
  %vm41 = vcmp.ge.f32.partialorder %v37, 0.0
  %vm42 = vcmp.ge.f32.partialorder %v38, 0.0
  %vm43 = vcmp.ge.f32.partialorder %v39, 0.0
  %vm44 = vcmp.ge.f32.partialorder %v40, 0.0
  %v45 = vld [vmem:[%s3] sm:$0xff]
  %47 = vset.pattern.permute.xlu0 0
  %48 = vperm.xlu0 %47, %v45
  %v49 = vpop.permute.xlu0 %48
  %v51 = vmul.f32 %v49, %v37
  %v52 = vmul.f32 %v49, %v38
  %v53 = vmul.f32 %v49, %v39
  %v54 = vmul.f32 %v49, %v40
  %v55 = vsel %vm41, %v37, %v51
  %v56 = vsel %vm42, %v38, %v52
  %v57 = vsel %vm43, %v39, %v53
  %v58 = vsel %vm44, %v40, %v54
  %59 = vst [vmem:[%s4] sm:$0xff] %v55
  %60 = vst [vmem:[%s4 + $0x8] sm:$0xff] %v56
  %61 = vst [vmem:[%s4 + $0x10] sm:$0xff] %v57
  %62 = vst [vmem:[%s4 + $0x18] sm:$0xff] %v58
  // Predicated region
  $region18: #{_conv_bn_act_impl.3} parent=0 // pred_check
    _
  $region19: #{_conv_bn_act_impl.3} parent=0 // pred_check_branch
    %64 = sbr.rel (0) target = $region21
  $region20: #{_conv_bn_act_impl.3} parent=0 // pred_region
    _
  $region21: #{_conv_bn_act_impl.3} parent=0 // pred_fallthru
    _
  // Predicated region
  $region22: #{_conv_bn_act_impl.3} parent=0 // pred_check
    _
  $region23: #{_conv_bn_act_impl.3} parent=0 // pred_check_branch
    %66 = sbr.rel (0) target = $region25
  $region24: #{_conv_bn_act_impl.3} parent=0 // pred_region
    _
  $region25: #{_conv_bn_act_impl.3} parent=0 // pred_fallthru
    _

// kernel: _conv_bn_act_impl.2
$region0: #{_conv_bn_act_impl.2}
  #allocation0 [shape = 'u32[]', space=smem, size = 0x4, offset = 0x4, fixed_abs, tag = 'smem constant byte address 0x4 - core index']
  #allocation1 [shape = 'u32[144,128]{1,0:T(1,128)}', space=vmem, size = 0x12000, scoped, tag = 'internal scratch']
  %s0 = inlined_call_operand.vmem [shape: bf16[1,36,512], index: 0, kind: input, shape index: {}]
  %s1 = inlined_call_operand.vmem [shape: bf16[1,8,36], index: 1, kind: input, shape index: {}]
  %s2 = inlined_call_operand.vmem [shape: f32[1,8,512], index: 2, kind: output, shape index: {0}]
  %s3 = inlined_call_operand.vmem [shape: f32[1,1,8,1], index: 3, kind: output, shape index: {1}]
  %s4 = inlined_call_operand.vmem [shape: f32[1,1,8,1], index: 4, kind: output, shape index: {2}]
  %5 = xla_tuple %s2, %s3, %s4
  %s6 = sld [smem:[#allocation0]]
  $region34: #{_conv_bn_act_impl.2} parent=0
    _
  %s8 = ssub.s32 1, %s6
  %s9 = scalar_select 0, %s8, %s6
  // Predicated region
  $region2: #{_conv_bn_act_impl.2} parent=0 // pred_check
    _
  $region3: #{_conv_bn_act_impl.2} parent=0 // pred_check_branch
    %11 = sbr.rel (0) target = $region5
  $region4: #{_conv_bn_act_impl.2} parent=0 // pred_region
    _
  $region5: #{_conv_bn_act_impl.2} parent=0 // pred_fallthru
    _
  // Predicated region
  $region6: #{_conv_bn_act_impl.2} parent=0 // pred_check
    _
  $region7: #{_conv_bn_act_impl.2} parent=0 // pred_check_branch
    %13 = sbr.rel (0) target = $region9
  $region8: #{_conv_bn_act_impl.2} parent=0 // pred_region
    _
  $region9: #{_conv_bn_act_impl.2} parent=0 // pred_fallthru
    _
  %v15 = vld [vmem:[%s1] sm:$0xf]
  %v16 = vld [vmem:[%s0] sm:$0xff]
  %v17 = vld [vmem:[%s0 + $0x8] sm:$0xff]
  %v18 = vld [vmem:[%s0 + $0x10] sm:$0xff]
  %v19 = vld [vmem:[%s0 + $0x18] sm:$0xff]
  %v20 = vld [vmem:[%s0 + $0x20] sm:$0xff]
  %v21 = vld [vmem:[%s0 + $0x28] sm:$0xff]
  %v22 = vld [vmem:[%s0 + $0x30] sm:$0xff]
  %v23 = vld [vmem:[%s0 + $0x38] sm:$0xff]
  %v24 = vld [vmem:[%s0 + $0x40] sm:$0x33]
  %v25 = vld [vmem:[%s0 + $0x48] sm:$0x33]
  %v36 = vunpack.c.l.b16 %v16
  %v37 = vunpack.c.h.b16 %v16
  %v38 = vunpack.c.l.b16 %v17
  %v39 = vunpack.c.h.b16 %v17
  %v40 = vunpack.c.l.b16 %v18
  %v41 = vunpack.c.h.b16 %v18
  %v42 = vunpack.c.l.b16 %v19
  %v43 = vunpack.c.h.b16 %v19
  %v44 = vunpack.c.l.b16 %v20
  %v45 = vunpack.c.h.b16 %v20
  %v46 = vunpack.c.l.b16 %v21
  %v47 = vunpack.c.h.b16 %v21
  %v48 = vunpack.c.l.b16 %v22
  %v49 = vunpack.c.h.b16 %v22
  %v50 = vunpack.c.l.b16 %v23
  %v51 = vunpack.c.h.b16 %v23
  %v52 = vunpack.c.l.b16 %v24
  %v53 = vunpack.c.h.b16 %v24
  %v54 = vunpack.c.l.b16 %v25
  %v55 = vunpack.c.h.b16 %v25
  %v56 = vpack.c.b16 %v40, %v36
  %v57 = vpack.c.b16 %v41, %v37
  %v58 = vpack.c.b16 %v42, %v38
  %v59 = vpack.c.b16 %v43, %v39
  %v60 = vpack.c.b16 %v48, %v44
  %v61 = vpack.c.b16 %v49, %v45
  %v62 = vpack.c.b16 %v50, %v46
  %v63 = vpack.c.b16 %v51, %v47
  %v64 = vpack.c.b16 %v52, %v52
  %v65 = vpack.c.b16 %v53, %v53
  %v66 = vpack.c.b16 %v54, %v54
  %v67 = vpack.c.b16 %v55, %v55
  %vm76 = vcmask 293888
  %v78 = vsel %vm76, %v15, 0
  %vm80 = vcmask 1041408
  %v82 = vsel %vm80, %v64, 0
  %v85 = vsel %vm80, %v65, 0
  %v88 = vsel %vm80, %v66, 0
  %v91 = vsel %vm80, %v67, 0
  %93 = vmatprep.subr.bf16.mxu0 %v57
  %94 = vmatpush1.bf16.msra.mxu0 %v56
  %95 = vmatprep.subr.bf16.mxu0 %v61
  %96 = vmatpush1.bf16.msra.mxu0 %v60
  %97 = vmatprep.subr.bf16.mxu0 %v85
  %98 = vmatpush1.bf16.msra.mxu0 %v82
  %99 = vmatprep.subr.bf16.mxu0 0
  %100 = vmatpush1.bf16.msra.mxu0 0
  %101 = vmatprep.subr.bf16.mxu0 0
  %102 = vmatpush1.bf16.msra.mxu0 0
  %103 = vmatprep.subr.bf16.mxu0 0
  %104 = vmatpush1.bf16.msra.mxu0 0
  %105 = vmatprep.subr.bf16.mxu0 0
  %106 = vmatpush1.bf16.msra.mxu0 0
  %107 = vmatprep.subr.bf16.mxu0 0
  %108 = vmatpush1.bf16.msra.mxu0 0
  %109 = vmatprep.subr.bf16.mxu0 0
  %110 = vmatpush1.bf16.msra.mxu0 0
  %111 = vmatprep.subr.bf16.mxu0 0
  %112 = vmatpush1.bf16.msra.mxu0 0
  %113 = vmatprep.subr.bf16.mxu0 0
  %114 = vmatpush1.bf16.msra.mxu0 0
  %115 = vmatprep.subr.bf16.mxu0 0
  %116 = vmatpush1.bf16.msra.mxu0 0
  %117 = vmatprep.subr.bf16.mxu0 0
  %118 = vmatpush1.bf16.msra.mxu0 0
  %119 = vmatprep.subr.bf16.mxu0 0
  %120 = vmatpush1.bf16.msra.mxu0 0
  %121 = vmatprep.subr.bf16.mxu0 0
  %122 = vmatpush1.bf16.msra.mxu0 0
  %123 = vmatprep.subr.bf16.mxu0 0
  %124 = vmatpush1.bf16.msra.mxu0 0
  %125 = vmatprep.mubr.bf16.mxu0 0
  %126 = vmatmul.mubr.bf16.gmra.mrb[0].mxu0 %v78
  %v127 = vpop.f32.mrb[0].mxu0
  %v128 = vadd.f32 0.0, %v127
  %v129 = vpop.f32.mrb[0].mxu0
  %v130 = vadd.f32 0.0, %v129
  %v131 = vpop.f32.mrb[0].mxu0
  %v132 = vpop.f32.mrb[0].mxu0
  %133 = vdwg.mxu0
  %134 = vmatprep.subr.bf16.mxu0 %v59
  %135 = vmatpush1.bf16.msra.mxu0 %v58
  %136 = vmatprep.subr.bf16.mxu0 %v63
  %137 = vmatpush1.bf16.msra.mxu0 %v62
  %138 = vmatprep.subr.bf16.mxu0 %v91
  %139 = vmatpush1.bf16.msra.mxu0 %v88
  %140 = vmatprep.subr.bf16.mxu0 0
  %141 = vmatpush1.bf16.msra.mxu0 0
  %142 = vmatprep.subr.bf16.mxu0 0
  %143 = vmatpush1.bf16.msra.mxu0 0
  %144 = vmatprep.subr.bf16.mxu0 0
  %145 = vmatpush1.bf16.msra.mxu0 0
  %146 = vmatprep.subr.bf16.mxu0 0
  %147 = vmatpush1.bf16.msra.mxu0 0
  %148 = vmatprep.subr.bf16.mxu0 0
  %149 = vmatpush1.bf16.msra.mxu0 0
  %150 = vmatprep.subr.bf16.mxu0 0
  %151 = vmatpush1.bf16.msra.mxu0 0
  %152 = vmatprep.subr.bf16.mxu0 0
  %153 = vmatpush1.bf16.msra.mxu0 0
  %154 = vmatprep.subr.bf16.mxu0 0
  %155 = vmatpush1.bf16.msra.mxu0 0
  %156 = vmatprep.subr.bf16.mxu0 0
  %157 = vmatpush1.bf16.msra.mxu0 0
  %158 = vmatprep.subr.bf16.mxu0 0
  %159 = vmatpush1.bf16.msra.mxu0 0
  %160 = vmatprep.subr.bf16.mxu0 0
  %161 = vmatpush1.bf16.msra.mxu0 0
  %162 = vmatprep.subr.bf16.mxu0 0
  %163 = vmatpush1.bf16.msra.mxu0 0
  %164 = vmatprep.subr.bf16.mxu0 0
  %165 = vmatpush1.bf16.msra.mxu0 0
  %166 = vmatprep.mubr.bf16.mxu0 0
  %167 = vmatmul.mubr.bf16.gmra.mrb[0].mxu0 %v78
  %v168 = vpop.f32.mrb[0].mxu0
  %v169 = vadd.f32 0.0, %v168
  %v170 = vpop.f32.mrb[0].mxu0
  %v171 = vadd.f32 0.0, %v170
  %v172 = vpop.f32.mrb[0].mxu0
  %v173 = vpop.f32.mrb[0].mxu0
  %174 = vdwg.mxu0
  %175 = vst [vmem:[%s2] sm:$0xff] %v128
  %176 = vst [vmem:[%s2 + $0x8] sm:$0xff] %v130
  %177 = vst [vmem:[%s2 + $0x10] sm:$0xff] %v169
  %178 = vst [vmem:[%s2 + $0x18] sm:$0xff] %v171
  %v179 = vadd.f32 %v128, %v130
  %v180 = vadd.f32 %v179, %v169
  %v181 = vadd.f32 %v180, %v171
  %182 = vadd.xlane.f32.xlu0 %v181
  %v183 = vpop.xlane.xlu0 %182
  %vm184 = vcmask 7168
  %185 = vst.msk [vmem:[%s3] sm:$0xff] %vm184, %v183
  %v186 = vmul.f32 %v128, %v128
  %v187 = vmul.f32 %v130, %v130
  %v188 = vmul.f32 %v169, %v169
  %v189 = vmul.f32 %v171, %v171
  %v190 = vadd.f32 %v186, %v187
  %v191 = vadd.f32 %v190, %v188
  %v192 = vadd.f32 %v191, %v189
  %193 = vadd.xlane.f32.xlu0 %v192
  %v194 = vpop.xlane.xlu0 %193
  %195 = vst.msk [vmem:[%s4] sm:$0xff] %vm184, %v194
  // Predicated region
  $region10: #{_conv_bn_act_impl.2} parent=0 // pred_check
    _
  $region11: #{_conv_bn_act_impl.2} parent=0 // pred_check_branch
    %197 = sbr.rel (0) target = $region13
  $region12: #{_conv_bn_act_impl.2} parent=0 // pred_region
    _
  $region13: #{_conv_bn_act_impl.2} parent=0 // pred_fallthru
    _
  // Predicated region
  $region14: #{_conv_bn_act_impl.2} parent=0 // pred_check
    _
  $region15: #{_conv_bn_act_impl.2} parent=0 // pred_check_branch
    %199 = sbr.rel (0) target = $region17
  $region16: #{_conv_bn_act_impl.2} parent=0 // pred_region
    _
  $region17: #{_conv_bn_act_impl.2} parent=0 // pred_fallthru
    _
  // Predicated region
  $region18: #{_conv_bn_act_impl.2} parent=0 // pred_check
    _
  $region19: #{_conv_bn_act_impl.2} parent=0 // pred_check_branch
    %201 = sbr.rel (0) target = $region21
  $region20: #{_conv_bn_act_impl.2} parent=0 // pred_region
    _
  $region21: #{_conv_bn_act_impl.2} parent=0 // pred_fallthru
    _
  // Predicated region
  $region22: #{_conv_bn_act_impl.2} parent=0 // pred_check
    _
  $region23: #{_conv_bn_act_impl.2} parent=0 // pred_check_branch
    %203 = sbr.rel (0) target = $region25
  $region24: #{_conv_bn_act_impl.2} parent=0 // pred_region
    _
  $region25: #{_conv_bn_act_impl.2} parent=0 // pred_fallthru
    _
  // Predicated region
  $region26: #{_conv_bn_act_impl.2} parent=0 // pred_check
    _
  $region27: #{_conv_bn_act_impl.2} parent=0 // pred_check_branch
    %205 = sbr.rel (0) target = $region29
  $region28: #{_conv_bn_act_impl.2} parent=0 // pred_region
    _
  $region29: #{_conv_bn_act_impl.2} parent=0 // pred_fallthru
    _
  // Predicated region
  $region30: #{_conv_bn_act_impl.2} parent=0 // pred_check
    _
  $region31: #{_conv_bn_act_impl.2} parent=0 // pred_check_branch
    %207 = sbr.rel (0) target = $region33
  $region32: #{_conv_bn_act_impl.2} parent=0 // pred_region
    _
  $region33: #{_conv_bn_act_impl.2} parent=0 // pred_fallthru
    _

</llo_original>
